<compile_context>
chip_gen: v7x
topology: tpu7x:2x2x1
jax: 0.10.0
libtpu: 0.0.40
codegen_flags: <defaults>
</compile_context>

<pallas_src>
import functools

import jax
import jax.numpy as jnp
from jax.experimental import pallas as pl
from jax.experimental.pallas import tpu as pltpu

HIDDEN = 32  # per-head hidden width (nn.Linear(..., 32))


# ----------------------------------------------------------------------------
# Kernel: fused twin-Q forward for one batch tile.
# ----------------------------------------------------------------------------
def _critic_kernel(state_ref, action_ref,
                   ws_ref, wa_ref, w25_ref, w36_ref, b_ref,
                   q_ref):
    # sa @ W14  ==  state @ Ws + action @ Wa   (concat folded into split weights)
    h = (jnp.dot(state_ref[...], ws_ref[...], preferred_element_type=jnp.float32)
         + jnp.dot(action_ref[...], wa_ref[...], preferred_element_type=jnp.float32)
         + b_ref[0:1, :])
    h = jnp.maximum(h, 0.0)

    h = jnp.dot(h, w25_ref[...], preferred_element_type=jnp.float32) + b_ref[1:2, :]
    h = jnp.maximum(h, 0.0)

    q = jnp.dot(h, w36_ref[...], preferred_element_type=jnp.float32) + b_ref[2:3, 0:2]
    q_ref[...] = q


# ----------------------------------------------------------------------------
# Param packing (done once, outside the per-call path).
# ----------------------------------------------------------------------------
def pack_params(params, state_dim):
    """Fuse the six Linear layers into 4 weight operands + 1 bias operand."""
    H = HIDDEN
    w14 = jnp.concatenate([params["w1"], params["w4"]], axis=1)       # (in, 2H)
    ws = w14[:state_dim]                                              # (S, 2H)
    wa = w14[state_dim:]                                              # (A, 2H)

    w25 = jnp.zeros((2 * H, 2 * H), jnp.float32)
    w25 = w25.at[:H, :H].set(params["w2"]).at[H:, H:].set(params["w5"])

    w36 = jnp.zeros((2 * H, 2), jnp.float32)
    w36 = w36.at[:H, 0:1].set(params["w3"]).at[H:, 1:2].set(params["w6"])

    b14 = jnp.concatenate([params["b1"], params["b4"]], axis=1)       # (1, 2H)
    b25 = jnp.concatenate([params["b2"], params["b5"]], axis=1)       # (1, 2H)
    b36 = jnp.zeros((1, 2 * H), jnp.float32)
    b36 = b36.at[0, 0].set(params["b3"][0, 0]).at[0, 1].set(params["b6"][0, 0])
    b_all = jnp.concatenate([b14, b25, b36], axis=0)                  # (3, 2H)

    return {"ws": ws, "wa": wa, "w25": w25, "w36": w36, "b": b_all}


def _pick_batch_tile(B):
    for tb in (256, 128, 8):
        if B % tb == 0:
            return tb
    return B


# ----------------------------------------------------------------------------
# Wrapper.
# ----------------------------------------------------------------------------
@functools.partial(jax.jit, static_argnames=())
def critic_forward(state, action, packed):
    B, S = state.shape
    A = action.shape[1]
    H2 = 2 * HIDDEN

    tb = _pick_batch_tile(B)
    grid = (B // tb,)

    in_specs = [
        pl.BlockSpec((tb, S), lambda i: (i, 0)),     # state tile
        pl.BlockSpec((tb, A), lambda i: (i, 0)),     # action tile
        pl.BlockSpec((S, H2), lambda i: (0, 0)),     # Ws
        pl.BlockSpec((A, H2), lambda i: (0, 0)),     # Wa
        pl.BlockSpec((H2, H2), lambda i: (0, 0)),    # W25 (block-diag)
        pl.BlockSpec((H2, 2), lambda i: (0, 0)),     # W36 (block-diag)
        pl.BlockSpec((3, H2), lambda i: (0, 0)),     # packed biases
    ]
    out_spec = pl.BlockSpec((tb, 2), lambda i: (i, 0))

    q = pl.pallas_call(
        _critic_kernel,
        out_shape=jax.ShapeDtypeStruct((B, 2), jnp.float32),
        grid=grid,
        in_specs=in_specs,
        out_specs=out_spec,
        compiler_params=pltpu.CompilerParams(
            dimension_semantics=("parallel",)),
    )(state, action, packed["ws"], packed["wa"], packed["w25"],
      packed["w36"], packed["b"])

    return q[:, 0:1], q[:, 1:2]


# ----------------------------------------------------------------------------
# Synthetic init + pure-JAX reference (mirrors the PyTorch module).
# ----------------------------------------------------------------------------
def init_params(key, state_dim, action_dim, hidden=HIDDEN):
    in_dim = state_dim + action_dim
    sizes = [
        ("w1", (in_dim, hidden)), ("b1", (1, hidden)),
        ("w2", (hidden, hidden)), ("b2", (1, hidden)),
        ("w3", (hidden, 1)),      ("b3", (1, 1)),
        ("w4", (in_dim, hidden)), ("b4", (1, hidden)),
        ("w5", (hidden, hidden)), ("b5", (1, hidden)),
        ("w6", (hidden, 1)),      ("b6", (1, 1)),
    ]
    params = {}
    keys = jax.random.split(key, len(sizes))
    for (name, shape), k in zip(sizes, keys):
        fan_in = shape[0] if name.startswith("w") else shape[1]
        bound = 1.0 / jnp.sqrt(jnp.float32(fan_in))
        params[name] = jax.random.uniform(
            k, shape, dtype=jnp.float32, minval=-bound, maxval=bound)
    return params


def critic_reference(state, action, params):
    sa = jnp.concatenate([state, action], axis=1)
    h1 = jax.nn.relu(sa @ params["w1"] + params["b1"])
    h1 = jax.nn.relu(h1 @ params["w2"] + params["b2"])
    q1 = h1 @ params["w3"] + params["b3"]
    h2 = jax.nn.relu(sa @ params["w4"] + params["b4"])
    h2 = jax.nn.relu(h2 @ params["w5"] + params["b5"])
    q2 = h2 @ params["w6"] + params["b6"]
    return q1, q2


if __name__ == "__main__":
    key = jax.random.PRNGKey(0)
    k_state, k_action, k_params = jax.random.split(key, 3)

    B, state_dim, action_dim = 8, 12, 4
    state = jax.random.normal(k_state, (B, state_dim), dtype=jnp.float32)
    action = jax.random.normal(k_action, (B, action_dim), dtype=jnp.float32)
    params = init_params(k_params, state_dim, action_dim)

    packed = pack_params(params, state_dim)          # one-time param fusion
    q1, q2 = critic_forward(state, action, packed)
    q1 = jax.block_until_ready(q1)
    q2 = jax.block_until_ready(q2)

    q1_ref, q2_ref = critic_reference(state, action, params)
    assert jnp.allclose(q1, q1_ref, atol=1e-5, rtol=1e-5), "q1 mismatch"
    assert jnp.allclose(q2, q2_ref, atol=1e-5, rtol=1e-5), "q2 mismatch"

    print("KERNEL_OK")
</pallas_src>

<mosaic_0001>
module attributes {stable_mosaic.version = 11 : i64} {
  func.func @_critic_kernel(%arg0: i32, %arg1: memref<8x12xf32, #tpu.memory_space<vmem>>, %arg2: memref<8x4xf32, #tpu.memory_space<vmem>>, %arg3: memref<12x64xf32, #tpu.memory_space<vmem>>, %arg4: memref<4x64xf32, #tpu.memory_space<vmem>>, %arg5: memref<64x64xf32, #tpu.memory_space<vmem>>, %arg6: memref<64x2xf32, #tpu.memory_space<vmem>>, %arg7: memref<3x64xf32, #tpu.memory_space<vmem>>, %arg8: memref<8x2xf32, #tpu.memory_space<vmem>>) attributes {dimension_semantics = [#tpu.dimension_semantics<parallel>], iteration_bounds = array<i64: 1>, scalar_prefetch = 0 : i64, scratch_operands = 0 : i64, tpu.core_type = #tpu.core_type<tc>, window_params = [{transform_indices = @transform_0, window_bounds = array<i64: 8, 12>}, {transform_indices = @transform_1, window_bounds = array<i64: 8, 4>}, {pipeline_mode = #tpu.pipeline_mode<synchronous>, transform_indices = @transform_2, window_bounds = array<i64: 12, 64>}, {pipeline_mode = #tpu.pipeline_mode<synchronous>, transform_indices = @transform_3, window_bounds = array<i64: 4, 64>}, {pipeline_mode = #tpu.pipeline_mode<synchronous>, transform_indices = @transform_4, window_bounds = array<i64: 64, 64>}, {pipeline_mode = #tpu.pipeline_mode<synchronous>, transform_indices = @transform_5, window_bounds = array<i64: 64, 2>}, {pipeline_mode = #tpu.pipeline_mode<synchronous>, transform_indices = @transform_6, window_bounds = array<i64: 3, 64>}, {transform_indices = @transform_7, window_bounds = array<i64: 8, 2>}]} {
    %c0 = arith.constant 0 : index
    %c0_0 = arith.constant 0 : index
    %0 = vector.load %arg1[%c0, %c0_0] : memref<8x12xf32, #tpu.memory_space<vmem>>, vector<8x12xf32>
    %c0_1 = arith.constant 0 : index
    %c0_2 = arith.constant 0 : index
    %1 = vector.load %arg3[%c0_1, %c0_2] : memref<12x64xf32, #tpu.memory_space<vmem>>, vector<12x64xf32>
    %cst = arith.constant dense<0.000000e+00> : vector<8x64xf32>
    %2 = tpu.matmul %0, %1, %cst {dimension_numbers = #tpu.dot_dimension_numbers<[1], [0], [0], [1], [0, 0, 1, 1], [], []>} : vector<8x12xf32>, vector<12x64xf32>, vector<8x64xf32> -> vector<8x64xf32>
    %c0_3 = arith.constant 0 : index
    %c0_4 = arith.constant 0 : index
    %3 = vector.load %arg2[%c0_3, %c0_4] : memref<8x4xf32, #tpu.memory_space<vmem>>, vector<8x4xf32>
    %c0_5 = arith.constant 0 : index
    %c0_6 = arith.constant 0 : index
    %4 = vector.load %arg4[%c0_5, %c0_6] : memref<4x64xf32, #tpu.memory_space<vmem>>, vector<4x64xf32>
    %cst_7 = arith.constant dense<0.000000e+00> : vector<8x64xf32>
    %5 = tpu.matmul %3, %4, %cst_7 {dimension_numbers = #tpu.dot_dimension_numbers<[1], [0], [0], [1], [0, 0, 1, 1], [], []>} : vector<8x4xf32>, vector<4x64xf32>, vector<8x64xf32> -> vector<8x64xf32>
    %6 = arith.addf %2, %5 : vector<8x64xf32>
    %c0_8 = arith.constant 0 : index
    %c0_9 = arith.constant 0 : index
    %7 = vector.load %arg7[%c0_8, %c0_9] : memref<3x64xf32, #tpu.memory_space<vmem>>, vector<1x64xf32>
    %8 = vector.broadcast %7 : vector<1x64xf32> to vector<8x64xf32>
    %9 = arith.addf %6, %8 : vector<8x64xf32>
    %cst_10 = arith.constant 0.000000e+00 : f32
    %10 = vector.broadcast %cst_10 : f32 to vector<8x64xf32>
    %11 = arith.maximumf %9, %10 : vector<8x64xf32>
    %c0_11 = arith.constant 0 : index
    %c0_12 = arith.constant 0 : index
    %12 = vector.load %arg5[%c0_11, %c0_12] : memref<64x64xf32, #tpu.memory_space<vmem>>, vector<64x64xf32>
    %cst_13 = arith.constant dense<0.000000e+00> : vector<8x64xf32>
    %13 = tpu.matmul %11, %12, %cst_13 {dimension_numbers = #tpu.dot_dimension_numbers<[1], [0], [0], [1], [0, 0, 1, 1], [], []>} : vector<8x64xf32>, vector<64x64xf32>, vector<8x64xf32> -> vector<8x64xf32>
    %c1 = arith.constant 1 : index
    %c0_14 = arith.constant 0 : index
    %14 = vector.load %arg7[%c1, %c0_14] : memref<3x64xf32, #tpu.memory_space<vmem>>, vector<1x64xf32>
    %15 = vector.broadcast %14 : vector<1x64xf32> to vector<8x64xf32>
    %16 = arith.addf %13, %15 : vector<8x64xf32>
    %cst_15 = arith.constant 0.000000e+00 : f32
    %17 = vector.broadcast %cst_15 : f32 to vector<8x64xf32>
    %18 = arith.maximumf %16, %17 : vector<8x64xf32>
    %c0_16 = arith.constant 0 : index
    %c0_17 = arith.constant 0 : index
    %19 = vector.load %arg6[%c0_16, %c0_17] : memref<64x2xf32, #tpu.memory_space<vmem>>, vector<64x2xf32>
    %cst_18 = arith.constant dense<0.000000e+00> : vector<8x2xf32>
    %20 = tpu.matmul %18, %19, %cst_18 {dimension_numbers = #tpu.dot_dimension_numbers<[1], [0], [0], [1], [0, 0, 1, 1], [], []>} : vector<8x64xf32>, vector<64x2xf32>, vector<8x2xf32> -> vector<8x2xf32>
    %c2 = arith.constant 2 : index
    %c0_19 = arith.constant 0 : index
    %21 = vector.load %arg7[%c2, %c0_19] : memref<3x64xf32, #tpu.memory_space<vmem>>, vector<1x2xf32>
    %22 = vector.broadcast %21 : vector<1x2xf32> to vector<8x2xf32>
    %23 = arith.addf %20, %22 : vector<8x2xf32>
    %c0_20 = arith.constant 0 : index
    %c0_21 = arith.constant 0 : index
    %24 = vector.load %arg8[%c0_20, %c0_21] : memref<8x2xf32, #tpu.memory_space<vmem>>, vector<8x2xf32>
    tpu.vector_store %arg8[%c0_20, %c0_21], %23 {strides = array<i32>} : memref<8x2xf32, #tpu.memory_space<vmem>>, vector<8x2xf32>,
    return
  }
  func.func @transform_0(%arg0: i32) -> (i32, i32) {
    %c0_i32 = arith.constant 0 : i32
    %c0_i32_0 = arith.constant 0 : i32
    return %arg0, %c0_i32 : i32, i32
  }
  func.func @transform_1(%arg0: i32) -> (i32, i32) {
    %c0_i32 = arith.constant 0 : i32
    %c0_i32_0 = arith.constant 0 : i32
    return %arg0, %c0_i32 : i32, i32
  }
  func.func @transform_2(%arg0: i32) -> (i32, i32) {
    %c0_i32 = arith.constant 0 : i32
    %c0_i32_0 = arith.constant 0 : i32
    %c0_i32_1 = arith.constant 0 : i32
    return %c0_i32, %c0_i32_0 : i32, i32
  }
  func.func @transform_3(%arg0: i32) -> (i32, i32) {
    %c0_i32 = arith.constant 0 : i32
    %c0_i32_0 = arith.constant 0 : i32
    %c0_i32_1 = arith.constant 0 : i32
    return %c0_i32, %c0_i32_0 : i32, i32
  }
  func.func @transform_4(%arg0: i32) -> (i32, i32) {
    %c0_i32 = arith.constant 0 : i32
    %c0_i32_0 = arith.constant 0 : i32
    %c0_i32_1 = arith.constant 0 : i32
    return %c0_i32, %c0_i32_0 : i32, i32
  }
  func.func @transform_5(%arg0: i32) -> (i32, i32) {
    %c0_i32 = arith.constant 0 : i32
    %c0_i32_0 = arith.constant 0 : i32
    %c0_i32_1 = arith.constant 0 : i32
    return %c0_i32, %c0_i32_0 : i32, i32
  }
  func.func @transform_6(%arg0: i32) -> (i32, i32) {
    %c0_i32 = arith.constant 0 : i32
    %c0_i32_0 = arith.constant 0 : i32
    %c0_i32_1 = arith.constant 0 : i32
    return %c0_i32, %c0_i32_0 : i32, i32
  }
  func.func @transform_7(%arg0: i32) -> (i32, i32) {
    %c0_i32 = arith.constant 0 : i32
    %c0_i32_0 = arith.constant 0 : i32
    return %arg0, %c0_i32 : i32, i32
  }
}

</mosaic_0001>

<llo_original>
// kernel: critic_forward.1
$region0: #{critic_forward.1}
  #allocation0 [shape = 'u32[]', space=smem, size = 0x4, offset = 0x4, fixed_abs, tag = 'smem constant byte address 0x4 - core index']
  #allocation1 [shape = 'u32[144,128]{1,0:T(1,128)}', space=vmem, size = 0x12000, scoped, tag = 'internal scratch']
  %s0 = inlined_call_operand.vmem [shape: f32[8,12], index: 0, kind: input, shape index: {}]
  %s1 = inlined_call_operand.vmem [shape: f32[8,4], index: 1, kind: input, shape index: {}]
  %s2 = inlined_call_operand.vmem [shape: f32[12,64], index: 2, kind: input, shape index: {}]
  %s3 = inlined_call_operand.vmem [shape: f32[4,64], index: 3, kind: input, shape index: {}]
  %s4 = inlined_call_operand.vmem [shape: f32[64,64], index: 4, kind: input, shape index: {}]
  %s5 = inlined_call_operand.vmem [shape: f32[64,2], index: 5, kind: input, shape index: {}]
  %s6 = inlined_call_operand.hbm [shape: f32[3,64], index: 6, kind: input, shape index: {}]
  %s7 = inlined_call_operand.vmem [shape: f32[8,2], index: 7, kind: output, shape index: {}]
  %s8 = sld [smem:[#allocation0]]
  $region42: #{critic_forward.1} parent=0
    _
  %s10 = ssub.s32 1, %s8
  %s11 = scalar_select 0, %s10, %s8
  $region1: #{critic_forward.1} parent=0
    #allocation2 [shape = 'u8[2048]{0}', space=vmem, size = 0x800, scoped, tag = 'input window, operand 6, single buffered']
    #allocation3 [shape = 's32[1]{0}', space=sflag, size = 0x4, scoped, tag = 'scoped memory for critic_forward.1']
    %12 = vsyncpa [#allocation3], 0
    // Predicated region
    $region2: #{critic_forward.1} parent=1 // pred_check
      _
    $region3: #{critic_forward.1} parent=1 // pred_check_branch
      %14 = sbr.rel (0) target = $region5
    $region4: #{critic_forward.1} parent=1 // pred_region
      _
    $region5: #{critic_forward.1} parent=1 // pred_fallthru
      _
    // Predicated region
    $region6: #{critic_forward.1} parent=1 // pred_check
      _
    $region7: #{critic_forward.1} parent=1 // pred_check_branch
      %16 = sbr.rel (0) target = $region9
    $region8: #{critic_forward.1} parent=1 // pred_region
      _
    $region9: #{critic_forward.1} parent=1 // pred_fallthru
      _
    // Predicated region
    $region10: #{critic_forward.1} parent=1 // pred_check
      _
    $region11: #{critic_forward.1} parent=1 // pred_check_branch
      %18 = sbr.rel (0) target = $region13
    $region12: #{critic_forward.1} parent=1 // pred_region
      _
    $region13: #{critic_forward.1} parent=1 // pred_fallthru
      _
    // Predicated region
    $region14: #{critic_forward.1} parent=1 // pred_check
      _
    $region15: #{critic_forward.1} parent=1 // pred_check_branch
      %20 = sbr.rel (0) target = $region17
    $region16: #{critic_forward.1} parent=1 // pred_region
      _
    $region17: #{critic_forward.1} parent=1 // pred_fallthru
      _
    // Predicated region
    $region18: #{critic_forward.1} parent=1 // pred_check
      _
    $region19: #{critic_forward.1} parent=1 // pred_check_branch
      %22 = sbr.rel (0) target = $region21
    $region20: #{critic_forward.1} parent=1 // pred_region
      _
    $region21: #{critic_forward.1} parent=1 // pred_fallthru
      _
    // Predicated region
    $region22: #{critic_forward.1} parent=1 // pred_check
      _
    $region23: #{critic_forward.1} parent=1 // pred_check_branch
      %24 = sbr.rel (0) target = $region25
    $region24: #{critic_forward.1} parent=1 // pred_region
      _
    $region25: #{critic_forward.1} parent=1 // pred_fallthru
      _
    // Predicated region
    $region26: #{critic_forward.1} parent=1 // pred_check
      _
    $region27: #{critic_forward.1} parent=1 // pred_check_branch
      %26 = sbr.rel (0) target = $region29
    $region28: #{critic_forward.1} parent=1 // pred_region
      %s28 = ssub.s32 64, 64
      %29 = vsyncadd [#allocation3], %s28
      %s31 = sshll.u32 [#allocation2], 4
      %s32 = int_to_ptr.vmem [resolvable:$true] %s31
      %34 = dma.hbm_to_vmem [thread:$0]  %s6, 64, %s32, [#allocation3]
    $region29: #{critic_forward.1} parent=1 // pred_fallthru
      _
    // Predicated region
    $region30: #{critic_forward.1} parent=1 // pred_check
      _
    $region31: #{critic_forward.1} parent=1 // pred_check_branch
      %36 = sbr.rel (0) target = $region33
    $region32: #{critic_forward.1} parent=1 // pred_region
      %37 = dma.done [#allocation3], 64
    $region33: #{critic_forward.1} parent=1 // pred_fallthru
      _
    %v38 = vld [vmem:[%s0] sm:$0xff]
    %v39 = vld [vmem:[%s2] sm:$0xff]
    %v40 = vld [vmem:[%s2 + $0x8] sm:$0xf]
    %v41 = vld [vmem:[%s1] sm:$0xff]
    %v42 = vld [vmem:[%s3] sm:$0xf]
    %vm43 = vcmask 31744
    %v45 = vsel %vm43, %v41, 0
    %vm47 = vcmask 1043456
    %v49 = vsel %vm47, %v42, 0
    %51 = vmatprep.subr.mxu0 0.0
    %52 = vmatpush1.msra.mxu0 %v49
    %53 = vmatprep.subr.mxu0 0.0
    %54 = vmatpush1.msra.mxu0 0.0
    %55 = vmatprep.subr.mxu0 0.0
    %56 = vmatpush1.msra.mxu0 0.0
    %57 = vmatprep.subr.mxu0 0.0
    %58 = vmatpush1.msra.mxu0 0.0
    %59 = vmatprep.subr.mxu0 0.0
    %60 = vmatpush1.msra.mxu0 0.0
    %61 = vmatprep.subr.mxu0 0.0
    %62 = vmatpush1.msra.mxu0 0.0
    %63 = vmatprep.subr.mxu0 0.0
    %64 = vmatpush1.msra.mxu0 0.0
    %65 = vmatprep.subr.mxu0 0.0
    %66 = vmatpush1.msra.mxu0 0.0
    %67 = vmatprep.subr.mxu0 0.0
    %68 = vmatpush1.msra.mxu0 0.0
    %69 = vmatprep.subr.mxu0 0.0
    %70 = vmatpush1.msra.mxu0 0.0
    %71 = vmatprep.subr.mxu0 0.0
    %72 = vmatpush1.msra.mxu0 0.0
    %73 = vmatprep.subr.mxu0 0.0
    %74 = vmatpush1.msra.mxu0 0.0
    %75 = vmatprep.subr.mxu0 0.0
    %76 = vmatpush1.msra.mxu0 0.0
    %77 = vmatprep.subr.mxu0 0.0
    %78 = vmatpush1.msra.mxu0 0.0
    %79 = vmatprep.subr.mxu0 0.0
    %80 = vmatpush1.msra.mxu0 0.0
    %81 = vmatprep.subr.mxu0 0.0
    %82 = vmatpush1.msra.mxu0 0.0
    %83 = vmatprep.subr.mxu0 0.0
    %84 = vmatpush1.msra.mxu0 0.0
    %85 = vmatprep.subr.mxu0 0.0
    %86 = vmatpush1.msra.mxu0 0.0
    %87 = vmatprep.subr.mxu0 0.0
    %88 = vmatpush1.msra.mxu0 0.0
    %89 = vmatprep.subr.mxu0 0.0
    %90 = vmatpush1.msra.mxu0 0.0
    %91 = vmatprep.subr.mxu0 0.0
    %92 = vmatpush1.msra.mxu0 0.0
    %93 = vmatprep.subr.mxu0 0.0
    %94 = vmatpush1.msra.mxu0 0.0
    %95 = vmatprep.subr.mxu0 0.0
    %96 = vmatpush1.msra.mxu0 0.0
    %97 = vmatprep.subr.mxu0 0.0
    %98 = vmatpush1.msra.mxu0 0.0
    %99 = vmatprep.subr.mxu0 0.0
    %100 = vmatpush1.msra.mxu0 0.0
    %101 = vmatprep.subr.mxu0 0.0
    %102 = vmatpush1.msra.mxu0 0.0
    %103 = vmatprep.subr.mxu0 0.0
    %104 = vmatpush1.msra.mxu0 0.0
    %105 = vmatprep.subr.mxu0 0.0
    %106 = vmatpush1.msra.mxu0 0.0
    %107 = vmatprep.subr.mxu0 0.0
    %108 = vmatpush1.msra.mxu0 0.0
    %109 = vmatprep.subr.mxu0 0.0
    %110 = vmatpush1.msra.mxu0 0.0
    %111 = vmatprep.subr.mxu0 0.0
    %112 = vmatpush1.msra.mxu0 0.0
    %113 = vmatprep.subr.mxu0 0.0
    %114 = vmatpush1.msra.mxu0 0.0
    %115 = vmatprep.mubr.f32.mxu0 0.0
    %116 = vmatmul.mubr.f32.gmra.mrb[0].mxu0 %v45
    %v117 = vpop.f32.mrb[0].mxu0
    %v118 = vadd.f32 0.0, %v117
    %v119 = vpop.f32.mrb[0].mxu0
    %120 = vdwg.mxu0
    %vm121 = vcmask 97280
    %v123 = vsel %vm121, %v38, 0
    %v126 = vsel %vm47, %v40, 0
    %128 = vmatprep.subr.mxu0 0.0
    %129 = vmatpush1.msra.mxu0 %v39
    %130 = vmatprep.subr.mxu0 0.0
    %131 = vmatpush1.msra.mxu0 %v126
    %132 = vmatprep.subr.mxu0 0.0
    %133 = vmatpush1.msra.mxu0 0.0
    %134 = vmatprep.subr.mxu0 0.0
    %135 = vmatpush1.msra.mxu0 0.0
    %136 = vmatprep.subr.mxu0 0.0
    %137 = vmatpush1.msra.mxu0 0.0
    %138 = vmatprep.subr.mxu0 0.0
    %139 = vmatpush1.msra.mxu0 0.0
    %140 = vmatprep.subr.mxu0 0.0
    %141 = vmatpush1.msra.mxu0 0.0
    %142 = vmatprep.subr.mxu0 0.0
    %143 = vmatpush1.msra.mxu0 0.0
    %144 = vmatprep.subr.mxu0 0.0
    %145 = vmatpush1.msra.mxu0 0.0
    %146 = vmatprep.subr.mxu0 0.0
    %147 = vmatpush1.msra.mxu0 0.0
    %148 = vmatprep.subr.mxu0 0.0
    %149 = vmatpush1.msra.mxu0 0.0
    %150 = vmatprep.subr.mxu0 0.0
    %151 = vmatpush1.msra.mxu0 0.0
    %152 = vmatprep.subr.mxu0 0.0
    %153 = vmatpush1.msra.mxu0 0.0
    %154 = vmatprep.subr.mxu0 0.0
    %155 = vmatpush1.msra.mxu0 0.0
    %156 = vmatprep.subr.mxu0 0.0
    %157 = vmatpush1.msra.mxu0 0.0
    %158 = vmatprep.subr.mxu0 0.0
    %159 = vmatpush1.msra.mxu0 0.0
    %160 = vmatprep.subr.mxu0 0.0
    %161 = vmatpush1.msra.mxu0 0.0
    %162 = vmatprep.subr.mxu0 0.0
    %163 = vmatpush1.msra.mxu0 0.0
    %164 = vmatprep.subr.mxu0 0.0
    %165 = vmatpush1.msra.mxu0 0.0
    %166 = vmatprep.subr.mxu0 0.0
    %167 = vmatpush1.msra.mxu0 0.0
    %168 = vmatprep.subr.mxu0 0.0
    %169 = vmatpush1.msra.mxu0 0.0
    %170 = vmatprep.subr.mxu0 0.0
    %171 = vmatpush1.msra.mxu0 0.0
    %172 = vmatprep.subr.mxu0 0.0
    %173 = vmatpush1.msra.mxu0 0.0
    %174 = vmatprep.subr.mxu0 0.0
    %175 = vmatpush1.msra.mxu0 0.0
    %176 = vmatprep.subr.mxu0 0.0
    %177 = vmatpush1.msra.mxu0 0.0
    %178 = vmatprep.subr.mxu0 0.0
    %179 = vmatpush1.msra.mxu0 0.0
    %180 = vmatprep.subr.mxu0 0.0
    %181 = vmatpush1.msra.mxu0 0.0
    %182 = vmatprep.subr.mxu0 0.0
    %183 = vmatpush1.msra.mxu0 0.0
    %184 = vmatprep.subr.mxu0 0.0
    %185 = vmatpush1.msra.mxu0 0.0
    %186 = vmatprep.subr.mxu0 0.0
    %187 = vmatpush1.msra.mxu0 0.0
    %188 = vmatprep.subr.mxu0 0.0
    %189 = vmatpush1.msra.mxu0 0.0
    %190 = vmatprep.subr.mxu0 0.0
    %191 = vmatpush1.msra.mxu0 0.0
    %192 = vmatprep.mubr.f32.mxu0 0.0
    %193 = vmatmul.mubr.f32.gmra.mrb[0].mxu0 %v123
    %v194 = vpop.f32.mrb[0].mxu0
    %v195 = vadd.f32 %v118, %v194
    %v196 = vpop.f32.mrb[0].mxu0
    %197 = vdwg.mxu0
    %v198 = vld [vmem:[#allocation2] sm:$0x1]
    %v199 = vlaneseq
    %v200 = vshrl.u32 %v199, 7
    %v201 = vsub.s32 0, %v200
    %v202 = vrot.slane %v198, %v201
    %v203 = vadd.f32 %v195, %v202
    %v204 = vmax.f32 %v203, 0.0
    %v205 = vld [vmem:[%s4] sm:$0xff]
    %v206 = vld [vmem:[%s4 + $0x8] sm:$0xff]
    %v207 = vld [vmem:[%s4 + $0x10] sm:$0xff]
    %v208 = vld [vmem:[%s4 + $0x18] sm:$0xff]
    %v209 = vld [vmem:[%s4 + $0x20] sm:$0xff]
    %v210 = vld [vmem:[%s4 + $0x28] sm:$0xff]
    %v211 = vld [vmem:[%s4 + $0x30] sm:$0xff]
    %v212 = vld [vmem:[%s4 + $0x38] sm:$0xff]
    %v213 = vld [vmem:[#allocation2 + $0x1] sm:$0x1]
    %v214 = vlaneseq
    %v215 = vshrl.u32 %v214, 7
    %v216 = vsub.s32 0, %v215
    %v217 = vrot.slane %v213, %v216
    %vm218 = vcmask 523264
    %v220 = vsel %vm218, %v204, 0
    %222 = vmatprep.subr.mxu0 0.0
    %223 = vmatpush1.msra.mxu0 %v205
    %224 = vmatprep.subr.mxu0 0.0
    %225 = vmatpush1.msra.mxu0 %v206
    %226 = vmatprep.subr.mxu0 0.0
    %227 = vmatpush1.msra.mxu0 %v207
    %228 = vmatprep.subr.mxu0 0.0
    %229 = vmatpush1.msra.mxu0 %v208
    %230 = vmatprep.subr.mxu0 0.0
    %231 = vmatpush1.msra.mxu0 %v209
    %232 = vmatprep.subr.mxu0 0.0
    %233 = vmatpush1.msra.mxu0 %v210
    %234 = vmatprep.subr.mxu0 0.0
    %235 = vmatpush1.msra.mxu0 %v211
    %236 = vmatprep.subr.mxu0 0.0
    %237 = vmatpush1.msra.mxu0 %v212
    %238 = vmatprep.subr.mxu0 0.0
    %239 = vmatpush1.msra.mxu0 0.0
    %240 = vmatprep.subr.mxu0 0.0
    %241 = vmatpush1.msra.mxu0 0.0
    %242 = vmatprep.subr.mxu0 0.0
    %243 = vmatpush1.msra.mxu0 0.0
    %244 = vmatprep.subr.mxu0 0.0
    %245 = vmatpush1.msra.mxu0 0.0
    %246 = vmatprep.subr.mxu0 0.0
    %247 = vmatpush1.msra.mxu0 0.0
    %248 = vmatprep.subr.mxu0 0.0
    %249 = vmatpush1.msra.mxu0 0.0
    %250 = vmatprep.subr.mxu0 0.0
    %251 = vmatpush1.msra.mxu0 0.0
    %252 = vmatprep.subr.mxu0 0.0
    %253 = vmatpush1.msra.mxu0 0.0
    %254 = vmatprep.subr.mxu0 0.0
    %255 = vmatpush1.msra.mxu0 0.0
    %256 = vmatprep.subr.mxu0 0.0
    %257 = vmatpush1.msra.mxu0 0.0
    %258 = vmatprep.subr.mxu0 0.0
    %259 = vmatpush1.msra.mxu0 0.0
    %260 = vmatprep.subr.mxu0 0.0
    %261 = vmatpush1.msra.mxu0 0.0
    %262 = vmatprep.subr.mxu0 0.0
    %263 = vmatpush1.msra.mxu0 0.0
    %264 = vmatprep.subr.mxu0 0.0
    %265 = vmatpush1.msra.mxu0 0.0
    %266 = vmatprep.subr.mxu0 0.0
    %267 = vmatpush1.msra.mxu0 0.0
    %268 = vmatprep.subr.mxu0 0.0
    %269 = vmatpush1.msra.mxu0 0.0
    %270 = vmatprep.subr.mxu0 0.0
    %271 = vmatpush1.msra.mxu0 0.0
    %272 = vmatprep.subr.mxu0 0.0
    %273 = vmatpush1.msra.mxu0 0.0
    %274 = vmatprep.subr.mxu0 0.0
    %275 = vmatpush1.msra.mxu0 0.0
    %276 = vmatprep.subr.mxu0 0.0
    %277 = vmatpush1.msra.mxu0 0.0
    %278 = vmatprep.subr.mxu0 0.0
    %279 = vmatpush1.msra.mxu0 0.0
    %280 = vmatprep.subr.mxu0 0.0
    %281 = vmatpush1.msra.mxu0 0.0
    %282 = vmatprep.subr.mxu0 0.0
    %283 = vmatpush1.msra.mxu0 0.0
    %284 = vmatprep.subr.mxu0 0.0
    %285 = vmatpush1.msra.mxu0 0.0
    %286 = vmatprep.mubr.f32.mxu0 0.0
    %287 = vmatmul.mubr.f32.gmra.mrb[0].mxu0 %v220
    %v288 = vpop.f32.mrb[0].mxu0
    %v289 = vadd.f32 %v217, %v288
    %v290 = vpop.f32.mrb[0].mxu0
    %291 = vdwg.mxu0
    %v292 = vmax.f32 %v289, 0.0
    %v293 = vld [vmem:[%s5] sm:$0xff]
    %v294 = vld [vmem:[%s5 + $0x8] sm:$0xff]
    %v295 = vld [vmem:[%s5 + $0x10] sm:$0xff]
    %v296 = vld [vmem:[%s5 + $0x18] sm:$0xff]
    %v297 = vld [vmem:[%s5 + $0x20] sm:$0xff]
    %v298 = vld [vmem:[%s5 + $0x28] sm:$0xff]
    %v299 = vld [vmem:[%s5 + $0x30] sm:$0xff]
    %v300 = vld [vmem:[%s5 + $0x38] sm:$0xff]
    %v301 = vld [vmem:[#allocation2 + $0x2] sm:$0x1]
    %v302 = vlaneseq
    %v303 = vshrl.u32 %v302, 7
    %v304 = vsub.s32 0, %v303
    %v305 = vrot.slane %v301, %v304
    %v307 = vsel %vm218, %v292, 0
    %309 = vmatprep.subr.mxu0 0.0
    %310 = vmatpush1.msra.mxu0 %v293
    %311 = vmatprep.subr.mxu0 0.0
    %312 = vmatpush1.msra.mxu0 %v294
    %313 = vmatprep.subr.mxu0 0.0
    %314 = vmatpush1.msra.mxu0 %v295
    %315 = vmatprep.subr.mxu0 0.0
    %316 = vmatpush1.msra.mxu0 %v296
    %317 = vmatprep.subr.mxu0 0.0
    %318 = vmatpush1.msra.mxu0 %v297
    %319 = vmatprep.subr.mxu0 0.0
    %320 = vmatpush1.msra.mxu0 %v298
    %321 = vmatprep.subr.mxu0 0.0
    %322 = vmatpush1.msra.mxu0 %v299
    %323 = vmatprep.subr.mxu0 0.0
    %324 = vmatpush1.msra.mxu0 %v300
    %325 = vmatprep.subr.mxu0 0.0
    %326 = vmatpush1.msra.mxu0 0.0
    %327 = vmatprep.subr.mxu0 0.0
    %328 = vmatpush1.msra.mxu0 0.0
    %329 = vmatprep.subr.mxu0 0.0
    %330 = vmatpush1.msra.mxu0 0.0
    %331 = vmatprep.subr.mxu0 0.0
    %332 = vmatpush1.msra.mxu0 0.0
    %333 = vmatprep.subr.mxu0 0.0
    %334 = vmatpush1.msra.mxu0 0.0
    %335 = vmatprep.subr.mxu0 0.0
    %336 = vmatpush1.msra.mxu0 0.0
    %337 = vmatprep.subr.mxu0 0.0
    %338 = vmatpush1.msra.mxu0 0.0
    %339 = vmatprep.subr.mxu0 0.0
    %340 = vmatpush1.msra.mxu0 0.0
    %341 = vmatprep.subr.mxu0 0.0
    %342 = vmatpush1.msra.mxu0 0.0
    %343 = vmatprep.subr.mxu0 0.0
    %344 = vmatpush1.msra.mxu0 0.0
    %345 = vmatprep.subr.mxu0 0.0
    %346 = vmatpush1.msra.mxu0 0.0
    %347 = vmatprep.subr.mxu0 0.0
    %348 = vmatpush1.msra.mxu0 0.0
    %349 = vmatprep.subr.mxu0 0.0
    %350 = vmatpush1.msra.mxu0 0.0
    %351 = vmatprep.subr.mxu0 0.0
    %352 = vmatpush1.msra.mxu0 0.0
    %353 = vmatprep.subr.mxu0 0.0
    %354 = vmatpush1.msra.mxu0 0.0
    %355 = vmatprep.subr.mxu0 0.0
    %356 = vmatpush1.msra.mxu0 0.0
    %357 = vmatprep.subr.mxu0 0.0
    %358 = vmatpush1.msra.mxu0 0.0
    %359 = vmatprep.subr.mxu0 0.0
    %360 = vmatpush1.msra.mxu0 0.0
    %361 = vmatprep.subr.mxu0 0.0
    %362 = vmatpush1.msra.mxu0 0.0
    %363 = vmatprep.subr.mxu0 0.0
    %364 = vmatpush1.msra.mxu0 0.0
    %365 = vmatprep.subr.mxu0 0.0
    %366 = vmatpush1.msra.mxu0 0.0
    %367 = vmatprep.subr.mxu0 0.0
    %368 = vmatpush1.msra.mxu0 0.0
    %369 = vmatprep.subr.mxu0 0.0
    %370 = vmatpush1.msra.mxu0 0.0
    %371 = vmatprep.subr.mxu0 0.0
    %372 = vmatpush1.msra.mxu0 0.0
    %373 = vmatprep.mubr.f32.mxu0 0.0
    %374 = vmatmul.mubr.f32.gmra.mrb[0].mxu0 %v307
    %v375 = vpop.f32.mrb[0].mxu0
    %v376 = vadd.f32 %v305, %v375
    %v377 = vpop.f32.mrb[0].mxu0
    %378 = vdwg.mxu0
    %vm379 = vcmask 15360
    %380 = vst.msk [vmem:[%s7] sm:$0xff] %vm379, %v376
    // Predicated region
    $region34: #{critic_forward.1} parent=1 // pred_check
      _
    $region35: #{critic_forward.1} parent=1 // pred_check_branch
      %382 = sbr.rel (0) target = $region37
    $region36: #{critic_forward.1} parent=1 // pred_region
      _
    $region37: #{critic_forward.1} parent=1 // pred_fallthru
      _
    // Predicated region
    $region38: #{critic_forward.1} parent=1 // pred_check
      _
    $region39: #{critic_forward.1} parent=1 // pred_check_branch
      %384 = sbr.rel (0) target = $region41
    $region40: #{critic_forward.1} parent=1 // pred_region
      _
    $region41: #{critic_forward.1} parent=1 // pred_fallthru
      _
    %385 = vsyncpa [#allocation3], 1

</llo_original>
